<compile_context>
chip_gen: v7x
topology: tpu7x:2x2x1
jax: 0.10.0
libtpu: 0.0.40
codegen_flags: <defaults>
</compile_context>

<pallas_src>
import functools

import jax
import jax.numpy as jnp
from jax.experimental import pallas as pl
from jax.experimental.pallas import tpu as pltpu

LN_EPS = 1e-5


# --------------------------------------------------------------------------- helpers

def _vmem_capacity_bytes():
    """Physical VMEM per TensorCore; conservative fallback if the query is unavailable."""
    try:
        return int(pltpu.get_tpu_info().vmem_capacity_bytes)
    except Exception:
        return 64 * 1024 * 1024  # v7x per-TC VMEM (worst case of the listed generations)


def _round_down8(x):
    return max(8, (int(x) // 8) * 8)


def _round_up8(x):
    return ((int(x) + 7) // 8) * 8


def _pick_tile(n, candidates):
    """Largest candidate that divides n; falls back to the full extent."""
    for c in candidates:
        if c <= n and n % c == 0:
            return c
    return n


# --------------------------------------------------------------------------- kernels

def _block_kernel_resident(*refs, has_residual, compute_dtype):
    """1-D grid over row tiles; the whole (D, D) weight is VMEM-resident."""
    if has_residual:
        x_ref, r_ref, w_ref, wb_ref, h_out_ref, res_out_ref = refs
    else:
        x_ref, w_ref, wb_ref, h_out_ref, res_out_ref = refs
        r_ref = None

    # Add (+ optional residual) in f32; residual stream stays f32 (residual_in_fp32).
    resid = x_ref[...].astype(jnp.float32)
    if has_residual:
        resid = resid + r_ref[...].astype(jnp.float32)
    res_out_ref[...] = resid.astype(res_out_ref.dtype)

    # LayerNorm (gamma/beta already folded into the weight/bias on the host).
    mean = jnp.mean(resid, axis=-1, keepdims=True)
    cent = resid - mean
    var = jnp.mean(cent * cent, axis=-1, keepdims=True)
    y_hat = cent * jax.lax.rsqrt(var + LN_EPS)

    # Mixer: (tm, D) @ (D, D) on the MXU, bf16 inputs, f32 accumulation.
    out = jnp.dot(y_hat.astype(compute_dtype), w_ref[...],
                  preferred_element_type=jnp.float32)
    out = out + wb_ref[...]
    h_out_ref[...] = out.astype(h_out_ref.dtype)


def _block_kernel_tiled(*refs, has_residual, compute_dtype):
    """2-D grid (row tiles, out-column tiles) for weights too large to keep resident."""
    if has_residual:
        x_ref, r_ref, w_ref, wb_ref, h_out_ref, res_out_ref, y_scratch = refs
    else:
        x_ref, w_ref, wb_ref, h_out_ref, res_out_ref, y_scratch = refs
        r_ref = None

    j = pl.program_id(1)  # output-column tile index (innermost, "arbitrary")

    # Add + LayerNorm once per row tile; cached in VMEM scratch for all column tiles.
    # NOTE: res_out is written only at j == 0 and relies on j being the innermost axis.
    @pl.when(j == 0)
    def _():
        resid = x_ref[...].astype(jnp.float32)
        if has_residual:
            resid = resid + r_ref[...].astype(jnp.float32)
        res_out_ref[...] = resid.astype(res_out_ref.dtype)

        mean = jnp.mean(resid, axis=-1, keepdims=True)
        cent = resid - mean
        var = jnp.mean(cent * cent, axis=-1, keepdims=True)
        y_scratch[...] = (cent * jax.lax.rsqrt(var + LN_EPS)).astype(y_scratch.dtype)

    out = jnp.dot(y_scratch[...], w_ref[...], preferred_element_type=jnp.float32)
    out = out + wb_ref[...]
    h_out_ref[...] = out.astype(h_out_ref.dtype)


# --------------------------------------------------------------------------- wrapper

def block_forward(hidden_states, residual, gamma, beta, mixer_w, mixer_b,
                  *, compute_dtype=jnp.bfloat16, out_dtype=None):
    """hidden_states, residual: (B, L, D). Returns (hidden_out, residual_out)."""
    B, L, D = hidden_states.shape
    rows = B * L
    has_residual = residual is not None
    if out_dtype is None:
        out_dtype = hidden_states.dtype

    # --- host-side parameter prep: fold LN gamma into W, beta into the bias (f32, then bf16)
    w_f32 = mixer_w.astype(jnp.float32)
    w_fold = gamma.astype(jnp.float32)[:, None] * w_f32
    b_fold = beta.astype(jnp.float32) @ w_f32 + mixer_b.astype(jnp.float32)
    w_c = w_fold.astype(compute_dtype)          # bf16 weight: MXU-native, half the HBM bytes
    wb2 = b_fold.reshape(1, D)                   # f32 bias

    # --- generation-aware VMEM budget
    vmem_cap = _vmem_capacity_bytes()
    vmem_limit = min((vmem_cap * 3) // 4, 100 * 1024 * 1024)   # ~48 MiB v7x, ~96 MiB v5e/v6e
    budget = int(vmem_limit * 0.85)                            # headroom for compiler scratch

    x_item = jnp.dtype(hidden_states.dtype).itemsize
    r_item = jnp.dtype(residual.dtype).itemsize if has_residual else 0
    o_item = jnp.dtype(out_dtype).itemsize
    w_item = jnp.dtype(compute_dtype).itemsize
    weight_bytes = D * D * w_item

    # Per-row VMEM cost of the double-buffered activation streams: x, r, res_out(f32), h_out.
    per_row = 2 * D * (x_item + r_item + 4 + o_item)

    weight_resident = (2 * weight_bytes + 8 * per_row) <= budget

    x2 = hidden_states.reshape(rows, D)
    r2 = residual.reshape(rows, D) if has_residual else None

    if weight_resident:
        # ------------------------------------------------ resident-weight fast path (1-D grid)
        tm_max = (budget - 2 * weight_bytes) // per_row
        tm = _round_down8(min(512, max(int(tm_max), 8)))
        tm = max(8, min(tm, _round_up8(rows)))

        rows_p = int(pl.cdiv(rows, tm)) * tm
        if rows_p != rows:
            x2 = jnp.pad(x2, ((0, rows_p - rows), (0, 0)))
            if has_residual:
                r2 = jnp.pad(r2, ((0, rows_p - rows), (0, 0)))

        row_spec = pl.BlockSpec((tm, D), lambda i: (i, 0))
        in_specs, operands = [row_spec], [x2]
        if has_residual:
            in_specs.append(row_spec)
            operands.append(r2)
        in_specs += [
            pl.BlockSpec((D, D), lambda i: (0, 0)),   # weight: fetched once, stays resident
            pl.BlockSpec((1, D), lambda i: (0, 0)),   # folded bias
        ]
        operands += [w_c, wb2]

        out_specs = [
            pl.BlockSpec((tm, D), lambda i: (i, 0)),  # hidden out (lane-dense, full D)
            pl.BlockSpec((tm, D), lambda i: (i, 0)),  # residual out (f32)
        ]
        grid = (rows_p // tm,)
        scratch_shapes = []
        dim_sem = ("parallel",)
        kernel = functools.partial(_block_kernel_resident,
                                   has_residual=has_residual,
                                   compute_dtype=compute_dtype)
        weight_traffic = weight_bytes
    else:
        # ------------------------------------------------ streamed-weight path (2-D grid, huge D)
        tn = _pick_tile(D, (512, 256, 128))
        denom = per_row + D * w_item                  # + y_scratch row cost
        tm_max = (budget - 3 * D * tn * w_item) // denom
        tm = _round_down8(min(512, max(int(tm_max), 8)))
        tm = max(8, min(tm, _round_up8(rows)))

        rows_p = int(pl.cdiv(rows, tm)) * tm
        if rows_p != rows:
            x2 = jnp.pad(x2, ((0, rows_p - rows), (0, 0)))
            if has_residual:
                r2 = jnp.pad(r2, ((0, rows_p - rows), (0, 0)))

        row_spec = pl.BlockSpec((tm, D), lambda i, j: (i, 0))
        in_specs, operands = [row_spec], [x2]
        if has_residual:
            in_specs.append(row_spec)
            operands.append(r2)
        in_specs += [
            pl.BlockSpec((D, tn), lambda i, j: (0, j),
                         pipeline_mode=pl.Buffered(3)),   # hide per-strip weight DMA
            pl.BlockSpec((1, tn), lambda i, j: (0, j)),
        ]
        operands += [w_c, wb2]

        out_specs = [
            pl.BlockSpec((tm, tn), lambda i, j: (i, j)),  # hidden out (lane-dense tiles)
            pl.BlockSpec((tm, D), lambda i, j: (i, 0)),   # residual out, resident across j
        ]
        grid = (rows_p // tm, D // tn)
        scratch_shapes = [pltpu.VMEM((tm, D), compute_dtype)]  # cached LN output
        dim_sem = ("parallel", "arbitrary")
        kernel = functools.partial(_block_kernel_tiled,
                                   has_residual=has_residual,
                                   compute_dtype=compute_dtype)
        weight_traffic = weight_bytes * (rows_p // tm)

    out_shape = (
        jax.ShapeDtypeStruct((rows_p, D), out_dtype),
        jax.ShapeDtypeStruct((rows_p, D), jnp.float32),   # residual_in_fp32
    )

    bytes_accessed = (rows_p * D * (x_item + r_item)       # activation / residual in
                      + weight_traffic + D * 4             # weight + folded bias
                      + rows_p * D * o_item                # hidden out
                      + rows_p * D * 4)                    # residual out (f32)
    cost = pl.CostEstimate(flops=2 * rows_p * D * D,
                           transcendentals=rows_p,         # one rsqrt per row
                           bytes_accessed=int(bytes_accessed))

    h_out, res_out = pl.pallas_call(
        kernel,
        out_shape=out_shape,
        grid_spec=pltpu.PrefetchScalarGridSpec(
            num_scalar_prefetch=0,
            grid=grid,
            in_specs=in_specs,
            out_specs=out_specs,
            scratch_shapes=scratch_shapes,
        ),
        compiler_params=pltpu.CompilerParams(
            dimension_semantics=dim_sem,
            vmem_limit_bytes=int(vmem_limit),
        ),
        cost_estimate=cost,
    )(*operands)

    h_out = h_out[:rows].reshape(B, L, D)
    res_out = res_out[:rows].reshape(B, L, D)
    return h_out, res_out


# --------------------------------------------------------------------------- reference & demo

def _reference(hidden_states, residual, gamma, beta, mixer_w, mixer_b):
    # Pure-JAX f32 reference mirroring the PyTorch forward
    # (fused_add_norm=False, residual_in_fp32=True).
    resid = hidden_states.astype(jnp.float32)
    if residual is not None:
        resid = resid + residual.astype(jnp.float32)
    mean = jnp.mean(resid, axis=-1, keepdims=True)
    var = jnp.mean((resid - mean) ** 2, axis=-1, keepdims=True)
    y = (resid - mean) * jax.lax.rsqrt(var + LN_EPS) * gamma + beta
    h = jnp.dot(y, mixer_w.astype(jnp.float32)) + mixer_b
    return h.astype(hidden_states.dtype), resid


if __name__ == "__main__":
    B, L, D = 2, 8, 32   # batch=2, seq=8, hidden dim=32 (small demo shapes)

    key = jax.random.PRNGKey(0)
    k_x, k_r, k_w, k_b, k_g, k_bt = jax.random.split(key, 6)

    hidden_states = jax.random.normal(k_x, (B, L, D), dtype=jnp.float32)
    residual = jax.random.normal(k_r, (B, L, D), dtype=jnp.float32)

    gamma = 1.0 + 0.1 * jax.random.normal(k_g, (D,), dtype=jnp.float32)   # non-trivial LN affine
    beta = 0.05 * jax.random.normal(k_bt, (D,), dtype=jnp.float32)
    mixer_w = (jax.random.normal(k_w, (D, D), dtype=jnp.float32)
               / jnp.sqrt(jnp.float32(D)))    # Linear(dim, dim), stored (in, out)
    mixer_b = jax.random.normal(k_b, (D,), dtype=jnp.float32) * 0.02

    # With residual (typical block) and without residual (first block fast path).
    h_out, res_out = block_forward(hidden_states, residual, gamma, beta, mixer_w, mixer_b)
    h0_out, res0_out = block_forward(hidden_states, None, gamma, beta, mixer_w, mixer_b)
    jax.block_until_ready((h_out, res_out, h0_out, res0_out))

    h_ref, r_ref = _reference(hidden_states, residual, gamma, beta, mixer_w, mixer_b)
    h0_ref, r0_ref = _reference(hidden_states, None, gamma, beta, mixer_w, mixer_b)

    assert h_out.shape == (B, L, D) and res_out.shape == (B, L, D)
    assert res_out.dtype == jnp.float32 and res0_out.dtype == jnp.float32
    # bf16 MXU matmul with folded gamma/beta vs f32 reference -> moderate tolerance.
    assert jnp.allclose(h_out, h_ref, atol=3e-2, rtol=3e-2)
    assert jnp.allclose(res_out, r_ref, atol=1e-6, rtol=1e-6)
    assert jnp.allclose(h0_out, h0_ref, atol=3e-2, rtol=3e-2)
    assert jnp.allclose(res0_out, r0_ref, atol=1e-6, rtol=1e-6)

    # Non-divisible row count (B*L = 10) exercises the padding / masked-tail path.
    hs_odd = jax.random.normal(k_x, (2, 5, D), dtype=jnp.float32)
    rs_odd = jax.random.normal(k_r, (2, 5, D), dtype=jnp.float32)
    h_odd, r_odd = block_forward(hs_odd, rs_odd, gamma, beta, mixer_w, mixer_b)
    jax.block_until_ready((h_odd, r_odd))
    h_odd_ref, r_odd_ref = _reference(hs_odd, rs_odd, gamma, beta, mixer_w, mixer_b)
    assert h_odd.shape == (2, 5, D)
    assert jnp.allclose(h_odd, h_odd_ref, atol=3e-2, rtol=3e-2)
    assert jnp.allclose(r_odd, r_odd_ref, atol=1e-6, rtol=1e-6)

    print("KERNEL_OK")
</pallas_src>

<mosaic_0001>
module attributes {stable_mosaic.version = 11 : i64} {
  func.func @_block_kernel_resident(%arg0: i32, %arg1: memref<16x32xf32, #tpu.memory_space<vmem>>, %arg2: memref<16x32xf32, #tpu.memory_space<vmem>>, %arg3: memref<32x32xbf16, #tpu.memory_space<vmem>>, %arg4: memref<1x32xf32, #tpu.memory_space<vmem>>, %arg5: memref<16x32xf32, #tpu.memory_space<vmem>>, %arg6: memref<16x32xf32, #tpu.memory_space<vmem>>) attributes {dimension_semantics = [#tpu.dimension_semantics<parallel>], iteration_bounds = array<i64: 1>, scalar_prefetch = 0 : i64, scratch_operands = 0 : i64, tpu.core_type = #tpu.core_type<tc>, window_params = [{transform_indices = @transform_0, window_bounds = array<i64: 16, 32>}, {transform_indices = @transform_1, window_bounds = array<i64: 16, 32>}, {pipeline_mode = #tpu.pipeline_mode<synchronous>, transform_indices = @transform_2, window_bounds = array<i64: 32, 32>}, {pipeline_mode = #tpu.pipeline_mode<synchronous>, transform_indices = @transform_3, window_bounds = array<i64: 1, 32>}, {transform_indices = @transform_4, window_bounds = array<i64: 16, 32>}, {transform_indices = @transform_5, window_bounds = array<i64: 16, 32>}]} {
    %c0 = arith.constant 0 : index
    %c0_0 = arith.constant 0 : index
    %0 = vector.load %arg1[%c0, %c0_0] : memref<16x32xf32, #tpu.memory_space<vmem>>, vector<16x32xf32>
    %c0_1 = arith.constant 0 : index
    %c0_2 = arith.constant 0 : index
    %1 = vector.load %arg2[%c0_1, %c0_2] : memref<16x32xf32, #tpu.memory_space<vmem>>, vector<16x32xf32>
    %2 = arith.addf %0, %1 : vector<16x32xf32>
    %c0_3 = arith.constant 0 : index
    %c0_4 = arith.constant 0 : index
    %3 = vector.load %arg6[%c0_3, %c0_4] : memref<16x32xf32, #tpu.memory_space<vmem>>, vector<16x32xf32>
    tpu.vector_store %arg6[%c0_3, %c0_4], %2 {strides = array<i32>} : memref<16x32xf32, #tpu.memory_space<vmem>>, vector<16x32xf32>,
    %cst = arith.constant dense<0.000000e+00> : vector<16xf32>
    %4 = vector.multi_reduction <add>, %2, %cst [1] : vector<16x32xf32> to vector<16xf32>
    %5 = vector.shape_cast %4 : vector<16xf32> to vector<16x1xf32>
    %cst_5 = arith.constant 3.200000e+01 : f32
    %6 = vector.broadcast %cst_5 : f32 to vector<16x1xf32>
    %7 = arith.divf %5, %6 : vector<16x1xf32>
    %8 = vector.broadcast %7 : vector<16x1xf32> to vector<16x32xf32>
    %9 = arith.subf %2, %8 : vector<16x32xf32>
    %10 = arith.mulf %9, %9 : vector<16x32xf32>
    %cst_6 = arith.constant dense<0.000000e+00> : vector<16xf32>
    %11 = vector.multi_reduction <add>, %10, %cst_6 [1] : vector<16x32xf32> to vector<16xf32>
    %12 = vector.shape_cast %11 : vector<16xf32> to vector<16x1xf32>
    %cst_7 = arith.constant 3.200000e+01 : f32
    %13 = vector.broadcast %cst_7 : f32 to vector<16x1xf32>
    %14 = arith.divf %12, %13 : vector<16x1xf32>
    %cst_8 = arith.constant 9.99999974E-6 : f32
    %15 = vector.broadcast %cst_8 : f32 to vector<16x1xf32>
    %16 = arith.addf %14, %15 : vector<16x1xf32>
    %17 = math.rsqrt %16 : vector<16x1xf32>
    %18 = vector.broadcast %17 : vector<16x1xf32> to vector<16x32xf32>
    %19 = arith.mulf %9, %18 : vector<16x32xf32>
    %20 = arith.truncf %19 : vector<16x32xf32> to vector<16x32xbf16>
    %c0_9 = arith.constant 0 : index
    %c0_10 = arith.constant 0 : index
    %21 = vector.load %arg3[%c0_9, %c0_10] : memref<32x32xbf16, #tpu.memory_space<vmem>>, vector<32x32xbf16>
    %cst_11 = arith.constant dense<0.000000e+00> : vector<16x32xf32>
    %22 = tpu.matmul %20, %21, %cst_11 {dimension_numbers = #tpu.dot_dimension_numbers<[1], [0], [0], [1], [0, 0, 1, 1], [], []>} : vector<16x32xbf16>, vector<32x32xbf16>, vector<16x32xf32> -> vector<16x32xf32>
    %c0_12 = arith.constant 0 : index
    %c0_13 = arith.constant 0 : index
    %23 = vector.load %arg4[%c0_12, %c0_13] : memref<1x32xf32, #tpu.memory_space<vmem>>, vector<1x32xf32>
    %24 = vector.broadcast %23 : vector<1x32xf32> to vector<16x32xf32>
    %25 = arith.addf %22, %24 : vector<16x32xf32>
    %c0_14 = arith.constant 0 : index
    %c0_15 = arith.constant 0 : index
    %26 = vector.load %arg5[%c0_14, %c0_15] : memref<16x32xf32, #tpu.memory_space<vmem>>, vector<16x32xf32>
    tpu.vector_store %arg5[%c0_14, %c0_15], %25 {strides = array<i32>} : memref<16x32xf32, #tpu.memory_space<vmem>>, vector<16x32xf32>,
    return
  }
  func.func @transform_0(%arg0: i32) -> (i32, i32) {
    %c0_i32 = arith.constant 0 : i32
    %c0_i32_0 = arith.constant 0 : i32
    return %arg0, %c0_i32 : i32, i32
  }
  func.func @transform_1(%arg0: i32) -> (i32, i32) {
    %c0_i32 = arith.constant 0 : i32
    %c0_i32_0 = arith.constant 0 : i32
    return %arg0, %c0_i32 : i32, i32
  }
  func.func @transform_2(%arg0: i32) -> (i32, i32) {
    %c0_i32 = arith.constant 0 : i32
    %c0_i32_0 = arith.constant 0 : i32
    %c0_i32_1 = arith.constant 0 : i32
    return %c0_i32, %c0_i32_0 : i32, i32
  }
  func.func @transform_3(%arg0: i32) -> (i32, i32) {
    %c0_i32 = arith.constant 0 : i32
    %c0_i32_0 = arith.constant 0 : i32
    %c0_i32_1 = arith.constant 0 : i32
    return %c0_i32, %c0_i32_0 : i32, i32
  }
  func.func @transform_4(%arg0: i32) -> (i32, i32) {
    %c0_i32 = arith.constant 0 : i32
    %c0_i32_0 = arith.constant 0 : i32
    return %arg0, %c0_i32 : i32, i32
  }
  func.func @transform_5(%arg0: i32) -> (i32, i32) {
    %c0_i32 = arith.constant 0 : i32
    %c0_i32_0 = arith.constant 0 : i32
    return %arg0, %c0_i32 : i32, i32
  }
}

</mosaic_0001>

<llo_original>
// kernel: tpu_custom_call.1
$region0: #{tpu_custom_call.1}
  #allocation0 [shape = 'u32[]', space=smem, size = 0x4, offset = 0x4, fixed_abs, tag = 'smem constant byte address 0x4 - core index']
  #allocation1 [shape = 'u32[144,128]{1,0:T(1,128)}', space=vmem, size = 0x12000, scoped, tag = 'internal scratch']
  %s0 = inlined_call_operand.hbm [shape: f32[16,32], index: 0, kind: input, shape index: {}]
  %s1 = inlined_call_operand.hbm [shape: f32[16,32], index: 1, kind: input, shape index: {}]
  %s2 = inlined_call_operand.hbm [shape: bf16[32,32], index: 2, kind: input, shape index: {}]
  %s3 = inlined_call_operand.vmem [shape: f32[1,32], index: 3, kind: input, shape index: {}]
  %s4 = inlined_call_operand.hbm [shape: f32[16,32], index: 4, kind: output, shape index: {0}]
  %s5 = inlined_call_operand.hbm [shape: f32[16,32], index: 5, kind: output, shape index: {1}]
  %6 = xla_tuple %s4, %s5
  %s7 = sld [smem:[#allocation0]]
  $region46: #{tpu_custom_call.1} parent=0
    _
  %s9 = ssub.s32 1, %s7
  %s10 = scalar_select 0, %s9, %s7
  $region1: #{tpu_custom_call.1} parent=0
    #allocation2 [shape = 'u8[8192]{0}', space=vmem, size = 0x2000, scoped, tag = 'input window, operand 0, single buffered']
    #allocation3 [shape = 's32[1]{0}', space=sflag, size = 0x4, scoped, tag = 'scoped memory for tpu_custom_call.1']
    #allocation4 [shape = 's32[1]{0}', space=sflag, size = 0x4, scoped, tag = 'scoped memory for tpu_custom_call.1']
    #allocation5 [shape = 'u8[8192]{0}', space=vmem, size = 0x2000, scoped, tag = 'input window, operand 1, single buffered']
    #allocation6 [shape = 's32[1]{0}', space=sflag, size = 0x4, scoped, tag = 'scoped memory for tpu_custom_call.1']
    #allocation7 [shape = 'u8[8192]{0}', space=vmem, size = 0x2000, scoped, tag = 'input window, operand 2, single buffered']
    #allocation8 [shape = 'u8[8192]{0}', space=vmem, size = 0x2000, scoped, tag = 'output window, operand 0, single buffered']
    #allocation9 [shape = 'u8[8192]{0}', space=vmem, size = 0x2000, scoped, tag = 'output window, operand 1, single buffered']
    #allocation10 [shape = 's32[1]{0}', space=sflag, size = 0x4, scoped, tag = 'scoped memory for tpu_custom_call.1']
    %11 = vsyncpa [#allocation3], 0
    %12 = vsyncpa [#allocation6], 0
    %13 = vsyncpa [#allocation4], 0
    %14 = vsyncpa [#allocation10], 0
    // Predicated region
    $region2: #{tpu_custom_call.1} parent=1 // pred_check
      _
    $region3: #{tpu_custom_call.1} parent=1 // pred_check_branch
      %16 = sbr.rel (0) target = $region5
    $region4: #{tpu_custom_call.1} parent=1 // pred_region
      %s18 = ssub.s32 256, 256
      %19 = vsyncadd [#allocation3], %s18
      %s20 = sshll.u32 [#allocation2], 4
      %s21 = int_to_ptr.vmem [resolvable:$true] %s20
      %26 = dma.hbm_to_vmem [thread:$0]  %s0, 256, %s21, [#allocation3], 128, 128, 8
    $region5: #{tpu_custom_call.1} parent=1 // pred_fallthru
      _
    // Predicated region
    $region6: #{tpu_custom_call.1} parent=1 // pred_check
      _
    $region7: #{tpu_custom_call.1} parent=1 // pred_check_branch
      %28 = sbr.rel (0) target = $region9
    $region8: #{tpu_custom_call.1} parent=1 // pred_region
      %s30 = ssub.s32 256, 256
      %31 = vsyncadd [#allocation6], %s30
      %s32 = sshll.u32 [#allocation5], 4
      %s33 = int_to_ptr.vmem [resolvable:$true] %s32
      %38 = dma.hbm_to_vmem [thread:$0]  %s1, 256, %s33, [#allocation6], 128, 128, 8
    $region9: #{tpu_custom_call.1} parent=1 // pred_fallthru
      _
    // Predicated region
    $region10: #{tpu_custom_call.1} parent=1 // pred_check
      _
    $region11: #{tpu_custom_call.1} parent=1 // pred_check_branch
      %40 = sbr.rel (0) target = $region13
    $region12: #{tpu_custom_call.1} parent=1 // pred_region
      %s42 = ssub.s32 256, 256
      %43 = vsyncadd [#allocation6], %s42
      %s44 = sshll.u32 [#allocation7], 4
      %s45 = int_to_ptr.vmem [resolvable:$true] %s44
      %50 = dma.hbm_to_vmem [thread:$0]  %s2, 256, %s45, [#allocation6], 64, 64, 4
    $region13: #{tpu_custom_call.1} parent=1 // pred_fallthru
      _
    // Predicated region
    $region14: #{tpu_custom_call.1} parent=1 // pred_check
      _
    $region15: #{tpu_custom_call.1} parent=1 // pred_check_branch
      %52 = sbr.rel (0) target = $region17
    $region16: #{tpu_custom_call.1} parent=1 // pred_region
      _
    $region17: #{tpu_custom_call.1} parent=1 // pred_fallthru
      _
    // Predicated region
    $region18: #{tpu_custom_call.1} parent=1 // pred_check
      _
    $region19: #{tpu_custom_call.1} parent=1 // pred_check_branch
      %54 = sbr.rel (0) target = $region21
    $region20: #{tpu_custom_call.1} parent=1 // pred_region
      %55 = dma.done [#allocation3], 256
    $region21: #{tpu_custom_call.1} parent=1 // pred_fallthru
      _
    // Predicated region
    $region22: #{tpu_custom_call.1} parent=1 // pred_check
      _
    $region23: #{tpu_custom_call.1} parent=1 // pred_check_branch
      %57 = sbr.rel (0) target = $region25
    $region24: #{tpu_custom_call.1} parent=1 // pred_region
      %58 = dma.done [#allocation6], 256
    $region25: #{tpu_custom_call.1} parent=1 // pred_fallthru
      _
    // Predicated region
    $region26: #{tpu_custom_call.1} parent=1 // pred_check
      _
    $region27: #{tpu_custom_call.1} parent=1 // pred_check_branch
      %60 = sbr.rel (0) target = $region29
    $region28: #{tpu_custom_call.1} parent=1 // pred_region
      %61 = dma.done [#allocation6], 256
    $region29: #{tpu_custom_call.1} parent=1 // pred_fallthru
      _
    %v63 = vld [vmem:[#allocation2] sm:$0xff]
    %v64 = vld [vmem:[#allocation2 + $0x8] sm:$0xff]
    %v65 = vld [vmem:[#allocation5] sm:$0xff]
    %v66 = vld [vmem:[#allocation5 + $0x8] sm:$0xff]
    %v67 = vadd.f32 %v63, %v65
    %v68 = vadd.f32 %v64, %v66
    %vm69 = vcmask 261120
    %70 = vst.msk [vmem:[#allocation9] sm:$0xff] %vm69, %v67
    %71 = vst.msk [vmem:[#allocation9 + $0x8] sm:$0xff] %vm69, %v68
    %v72 = vsel %vm69, %v67, 0.0
    %73 = vadd.xlane.f32.xlu0 %v72
    %v74 = vpop.xlane.xlu0 %73
    %v75 = vsel %vm69, %v68, 0.0
    %76 = vadd.xlane.f32.xlu0 %v75
    %v77 = vpop.xlane.xlu0 %76
    %v78 = vrcp.pop 32.0
    %v79 = vmul.f32 %v74, %v78
    %v80 = vmul.f32 %v77, %v78
    %v81 = vsub.f32 %v67, %v79
    %v82 = vsub.f32 %v68, %v80
    %v83 = vmul.f32 %v81, %v81
    %v84 = vmul.f32 %v82, %v82
    %v85 = vsel %vm69, %v83, 0.0
    %86 = vadd.xlane.f32.xlu0 %v85
    %v87 = vpop.xlane.xlu0 %86
    %v88 = vsel %vm69, %v84, 0.0
    %89 = vadd.xlane.f32.xlu0 %v88
    %v90 = vpop.xlane.xlu0 %89
    %v91 = vmul.f32 %v87, %v78
    %v92 = vmul.f32 %v90, %v78
    %v93 = vadd.f32 %v91, 1e-05
    %v94 = vadd.f32 %v92, 1e-05
    %v95 = vrsqrt.pop %v93
    %v96 = vrsqrt.pop %v94
    %v97 = vmul.f32 %v81, %v95
    %v98 = vmul.f32 %v82, %v96
    %v99 = vpack.c.bf16 %v98, %v97
    %v100 = vld [vmem:[#allocation7] sm:$0xf]
    %v101 = vld [vmem:[#allocation7 + $0x4] sm:$0xf]
    %v102 = vld [vmem:[#allocation7 + $0x8] sm:$0xf]
    %v103 = vld [vmem:[#allocation7 + $0xc] sm:$0xf]
    %v104 = vld [vmem:[%s3] sm:$0x1]
    %v106 = vlaneseq
    %v107 = vshrl.u32 %v106, 7
    %v108 = vsub.s32 0, %v107
    %v109 = vrot.slane %v104, %v108
    %v115 = vunpack.c.l.b16 %v100
    %v116 = vunpack.c.l.b16 %v101
    %v117 = vunpack.c.l.b16 %v102
    %v118 = vunpack.c.l.b16 %v103
    %v119 = vpack.c.b16 %v116, %v115
    %v120 = vpack.c.b16 %v118, %v117
    %v124 = vsel %vm69, %v99, 0
    %126 = vmatprep.subr.bf16.mxu0 0
    %127 = vmatpush1.bf16.msra.mxu0 %v119
    %128 = vmatprep.subr.bf16.mxu0 0
    %129 = vmatpush1.bf16.msra.mxu0 %v120
    %130 = vmatprep.subr.bf16.mxu0 0
    %131 = vmatpush1.bf16.msra.mxu0 0
    %132 = vmatprep.subr.bf16.mxu0 0
    %133 = vmatpush1.bf16.msra.mxu0 0
    %134 = vmatprep.subr.bf16.mxu0 0
    %135 = vmatpush1.bf16.msra.mxu0 0
    %136 = vmatprep.subr.bf16.mxu0 0
    %137 = vmatpush1.bf16.msra.mxu0 0
    %138 = vmatprep.subr.bf16.mxu0 0
    %139 = vmatpush1.bf16.msra.mxu0 0
    %140 = vmatprep.subr.bf16.mxu0 0
    %141 = vmatpush1.bf16.msra.mxu0 0
    %142 = vmatprep.subr.bf16.mxu0 0
    %143 = vmatpush1.bf16.msra.mxu0 0
    %144 = vmatprep.subr.bf16.mxu0 0
    %145 = vmatpush1.bf16.msra.mxu0 0
    %146 = vmatprep.subr.bf16.mxu0 0
    %147 = vmatpush1.bf16.msra.mxu0 0
    %148 = vmatprep.subr.bf16.mxu0 0
    %149 = vmatpush1.bf16.msra.mxu0 0
    %150 = vmatprep.subr.bf16.mxu0 0
    %151 = vmatpush1.bf16.msra.mxu0 0
    %152 = vmatprep.subr.bf16.mxu0 0
    %153 = vmatpush1.bf16.msra.mxu0 0
    %154 = vmatprep.subr.bf16.mxu0 0
    %155 = vmatpush1.bf16.msra.mxu0 0
    %156 = vmatprep.subr.bf16.mxu0 0
    %157 = vmatpush1.bf16.msra.mxu0 0
    %158 = vmatprep.mubr.bf16.mxu0 0
    %159 = vmatmul.mubr.bf16.gmra.mrb[0].mxu0 %v124
    %v160 = vpop.f32.mrb[0].mxu0
    %v161 = vadd.f32 %v109, %v160
    %v162 = vpop.f32.mrb[0].mxu0
    %v163 = vpop.f32.mrb[0].mxu0
    %v164 = vadd.f32 %v109, %v163
    %v165 = vpop.f32.mrb[0].mxu0
    %166 = vdwg.mxu0
    %167 = vst.msk [vmem:[#allocation8] sm:$0xff] %vm69, %v161
    %168 = vst.msk [vmem:[#allocation8 + $0x8] sm:$0xff] %vm69, %v164
    // Predicated region
    $region30: #{tpu_custom_call.1} parent=1 // pred_check
      _
    $region31: #{tpu_custom_call.1} parent=1 // pred_check_branch
      %170 = sbr.rel (0) target = $region33
    $region32: #{tpu_custom_call.1} parent=1 // pred_region
      %s172 = ssub.s32 256, 256
      %173 = vsyncadd [#allocation4], %s172
      %s174 = sshll.u32 [#allocation8], 4
      %s175 = int_to_ptr.vmem [resolvable:$true] %s174
      %180 = dma.vmem_to_hbm [thread:$0]  %s175, 256, %s4, [#allocation4], 128, 128, 8
    $region33: #{tpu_custom_call.1} parent=1 // pred_fallthru
      _
    // Predicated region
    $region34: #{tpu_custom_call.1} parent=1 // pred_check
      _
    $region35: #{tpu_custom_call.1} parent=1 // pred_check_branch
      %182 = sbr.rel (0) target = $region37
    $region36: #{tpu_custom_call.1} parent=1 // pred_region
      %s184 = ssub.s32 256, 256
      %185 = vsyncadd [#allocation10], %s184
      %s186 = sshll.u32 [#allocation9], 4
      %s187 = int_to_ptr.vmem [resolvable:$true] %s186
      %192 = dma.vmem_to_hbm [thread:$0]  %s187, 256, %s5, [#allocation10], 128, 128, 8
    $region37: #{tpu_custom_call.1} parent=1 // pred_fallthru
      _
    // Predicated region
    $region38: #{tpu_custom_call.1} parent=1 // pred_check
      _
    $region39: #{tpu_custom_call.1} parent=1 // pred_check_branch
      %194 = sbr.rel (0) target = $region41
    $region40: #{tpu_custom_call.1} parent=1 // pred_region
      %195 = dma.done [#allocation4], 256
    $region41: #{tpu_custom_call.1} parent=1 // pred_fallthru
      _
    // Predicated region
    $region42: #{tpu_custom_call.1} parent=1 // pred_check
      _
    $region43: #{tpu_custom_call.1} parent=1 // pred_check_branch
      %197 = sbr.rel (0) target = $region45
    $region44: #{tpu_custom_call.1} parent=1 // pred_region
      %198 = dma.done [#allocation10], 256
    $region45: #{tpu_custom_call.1} parent=1 // pred_fallthru
      _
    %199 = vsyncpa [#allocation3], 1
    %200 = vsyncpa [#allocation6], 1
    %201 = vsyncpa [#allocation4], 1
    %202 = vsyncpa [#allocation10], 1

</llo_original>
